<compile_context>
chip_gen: v5e
topology: v5e:2x2
jax: 0.10.0
libtpu: 0.0.40
codegen_flags: <defaults>
</compile_context>

<pallas_src>
import jax
import jax.numpy as jnp
from jax.experimental import pallas as pl
from jax.experimental.pallas import tpu as pltpu

HIDDEN = 50
OBS_PAD = 8        # observation features padded to one sublane group
H_PAD = 128        # hidden / output features padded to one full lane width
# Packed parameter slab layout (rows of a (272, 128) f32 array):
#   [  0:  8)  w1   (obs_pad x 128)
#   [  8:136)  w2   (128 x 128)
#   [136:264)  w3   (128 x 128)
#   [264:272)  biases: row 264 = b1, 265 = b2, 266 = b3, remaining rows zero
P_ROWS = OBS_PAD + 2 * H_PAD + 8   # 272
TB_MAX = 512       # batch tile (multiple of 8)


def mlp_kernel(x_ref, p_ref, o_ref):
    x = x_ref[...]                                            # (TB, 8) f32

    w1 = p_ref[0:OBS_PAD, :]                                  # (8, 128)
    w2 = p_ref[OBS_PAD:OBS_PAD + H_PAD, :]                    # (128, 128)
    w3 = p_ref[OBS_PAD + H_PAD:OBS_PAD + 2 * H_PAD, :]        # (128, 128)
    biases = p_ref[OBS_PAD + 2 * H_PAD:P_ROWS, :]             # (8, 128)
    b1 = biases[0:1, :]
    b2 = biases[1:2, :]
    b3 = biases[2:3, :]

    h1 = jnp.dot(x, w1, preferred_element_type=jnp.float32)
    h1 = jnp.maximum(h1 + b1, 0.0)                            # (TB, 128)
    h2 = jnp.dot(h1, w2, preferred_element_type=jnp.float32)
    h2 = jnp.maximum(h2 + b2, 0.0)                            # (TB, 128)
    q = jnp.dot(h2, w3, preferred_element_type=jnp.float32) + b3
    o_ref[...] = q.astype(o_ref.dtype)                        # (TB, 128)


def _round_up(n, m):
    return ((n + m - 1) // m) * m


def pack_params(params, obs_size, n_act, hidden=HIDDEN):
    """Pack (w1,b1,w2,b2,w3,b3) into one zero-padded (272, 128) f32 slab."""
    w1, b1, w2, b2, w3, b3 = params
    p = jnp.zeros((P_ROWS, H_PAD), jnp.float32)
    p = p.at[0:obs_size, 0:hidden].set(w1)
    p = p.at[OBS_PAD:OBS_PAD + hidden, 0:hidden].set(w2)
    p = p.at[OBS_PAD + H_PAD:OBS_PAD + H_PAD + hidden, 0:n_act].set(w3)
    p = p.at[OBS_PAD + 2 * H_PAD + 0, 0:hidden].set(jnp.reshape(b1, (-1,)))
    p = p.at[OBS_PAD + 2 * H_PAD + 1, 0:hidden].set(jnp.reshape(b2, (-1,)))
    p = p.at[OBS_PAD + 2 * H_PAD + 2, 0:n_act].set(jnp.reshape(b3, (-1,)))
    return p


def mlp_forward(x, packed_params, n_act):
    """x: (B, obs_size) f32; packed_params: (272, 128) f32 -> (B, n_act) f32."""
    B, obs = x.shape
    TB = min(TB_MAX, _round_up(max(B, 1), 8))
    B_pad = _round_up(B, TB)

    # Zero-pad batch to a tile multiple and features to the sublane group.
    x_pad = jnp.zeros((B_pad, OBS_PAD), jnp.float32).at[:B, :obs].set(x)

    flops = 2 * B_pad * (OBS_PAD * H_PAD + H_PAD * H_PAD + H_PAD * H_PAD)
    bytes_accessed = 4 * (x_pad.size + packed_params.size + B_pad * H_PAD)

    out = pl.pallas_call(
        mlp_kernel,
        out_shape=jax.ShapeDtypeStruct((B_pad, H_PAD), jnp.float32),
        grid_spec=pltpu.PrefetchScalarGridSpec(
            num_scalar_prefetch=0,
            grid=(B_pad // TB,),
            in_specs=[
                # Streamed, pipelined batch tiles of x.
                pl.BlockSpec((TB, OBS_PAD), lambda i: (i, 0)),
                # Parameter slab: constant block index -> stays VMEM-resident.
                pl.BlockSpec((P_ROWS, H_PAD), lambda i: (0, 0)),
            ],
            out_specs=pl.BlockSpec((TB, H_PAD), lambda i: (i, 0)),
        ),
        compiler_params=pltpu.CompilerParams(
            dimension_semantics=("parallel",)),   # dual-TC on v7x; no-op v5e/v6e
        cost_estimate=pl.CostEstimate(
            flops=flops, transcendentals=0, bytes_accessed=bytes_accessed),
    )(x_pad, packed_params)

    # Slice the lane-dense slab back to the real batch / action count.
    return out[:B, :n_act]


def init_params(key, obs_size, n_act, hidden=HIDDEN):
    # Deterministic init mimicking PyTorch's default Linear init
    # (uniform in +-1/sqrt(fan_in)).
    def linear(key, fan_in, fan_out):
        kw, kb = jax.random.split(key)
        bound = 1.0 / jnp.sqrt(fan_in)
        w = jax.random.uniform(kw, (fan_in, fan_out), jnp.float32, -bound, bound)
        b = jax.random.uniform(kb, (1, fan_out), jnp.float32, -bound, bound)
        return w, b

    k1, k2, k3 = jax.random.split(key, 3)
    w1, b1 = linear(k1, obs_size, hidden)
    w2, b2 = linear(k2, hidden, hidden)
    w3, b3 = linear(k3, hidden, n_act)
    return w1, b1, w2, b2, w3, b3


if __name__ == "__main__":
    # CartPole-v1: observation dim = 4, actions = 2.
    obs_size, n_act, batch = 4, 2, 2

    key = jax.random.PRNGKey(0)
    kx, kp = jax.random.split(key)
    x = jax.random.normal(kx, (batch, obs_size), dtype=jnp.float32)
    params = init_params(kp, obs_size, n_act)
    packed = pack_params(params, obs_size, n_act)

    q_values = mlp_forward(x, packed, n_act)
    jax.block_until_ready(q_values)

    # Pure-JAX reference check (unpadded f32 math).
    w1, b1, w2, b2, w3, b3 = params
    ref = jnp.maximum(x @ w1 + b1, 0.0)
    ref = jnp.maximum(ref @ w2 + b2, 0.0)
    ref = ref @ w3 + b3
    assert q_values.shape == (batch, n_act)
    assert jnp.allclose(q_values, ref, atol=1e-4, rtol=1e-5), "mismatch vs reference"

    # TODO(synk): pfrl.action_value.DiscreteActionValue is a Python wrapper
    # (argmax/max helpers over Q-values); no kernel equivalent needed.
    print("KERNEL_OK")
</pallas_src>

<mosaic_0001>
module attributes {stable_mosaic.version = 11 : i64} {
  func.func @mlp_kernel(%arg0: i32, %arg1: memref<8x8xf32, #tpu.memory_space<vmem>>, %arg2: memref<272x128xf32, #tpu.memory_space<vmem>>, %arg3: memref<8x128xf32, #tpu.memory_space<vmem>>) attributes {dimension_semantics = [#tpu.dimension_semantics<parallel>], iteration_bounds = array<i64: 1>, scalar_prefetch = 0 : i64, scratch_operands = 0 : i64, tpu.core_type = #tpu.core_type<tc>, window_params = [{transform_indices = @transform_0, window_bounds = array<i64: 8, 8>}, {pipeline_mode = #tpu.pipeline_mode<synchronous>, transform_indices = @transform_1, window_bounds = array<i64: 272, 128>}, {transform_indices = @transform_2, window_bounds = array<i64: 8, 128>}]} {
    %c0 = arith.constant 0 : index
    %c0_0 = arith.constant 0 : index
    %0 = vector.load %arg1[%c0, %c0_0] : memref<8x8xf32, #tpu.memory_space<vmem>>, vector<8x8xf32>
    %c0_1 = arith.constant 0 : index
    %c0_2 = arith.constant 0 : index
    %1 = vector.load %arg2[%c0_1, %c0_2] : memref<272x128xf32, #tpu.memory_space<vmem>>, vector<8x128xf32>
    %c8 = arith.constant 8 : index
    %c0_3 = arith.constant 0 : index
    %2 = vector.load %arg2[%c8, %c0_3] : memref<272x128xf32, #tpu.memory_space<vmem>>, vector<128x128xf32>
    %c136 = arith.constant 136 : index
    %c0_4 = arith.constant 0 : index
    %3 = vector.load %arg2[%c136, %c0_4] : memref<272x128xf32, #tpu.memory_space<vmem>>, vector<128x128xf32>
    %c264 = arith.constant 264 : index
    %c0_5 = arith.constant 0 : index
    %4 = vector.load %arg2[%c264, %c0_5] : memref<272x128xf32, #tpu.memory_space<vmem>>, vector<8x128xf32>
    %5 = vector.extract_strided_slice %4 {offsets = [0, 0], sizes = [1, 128], strides = [1, 1]} : vector<8x128xf32> to vector<1x128xf32>
    %6 = vector.extract_strided_slice %4 {offsets = [1, 0], sizes = [1, 128], strides = [1, 1]} : vector<8x128xf32> to vector<1x128xf32>
    %7 = vector.extract_strided_slice %4 {offsets = [2, 0], sizes = [1, 128], strides = [1, 1]} : vector<8x128xf32> to vector<1x128xf32>
    %cst = arith.constant dense<0.000000e+00> : vector<8x128xf32>
    %8 = tpu.matmul %0, %1, %cst {dimension_numbers = #tpu.dot_dimension_numbers<[1], [0], [0], [1], [0, 0, 1, 1], [], []>} : vector<8x8xf32>, vector<8x128xf32>, vector<8x128xf32> -> vector<8x128xf32>
    %9 = vector.broadcast %5 : vector<1x128xf32> to vector<8x128xf32>
    %10 = arith.addf %8, %9 : vector<8x128xf32>
    %cst_6 = arith.constant 0.000000e+00 : f32
    %11 = vector.broadcast %cst_6 : f32 to vector<8x128xf32>
    %12 = arith.maximumf %10, %11 : vector<8x128xf32>
    %cst_7 = arith.constant dense<0.000000e+00> : vector<8x128xf32>
    %13 = tpu.matmul %12, %2, %cst_7 {dimension_numbers = #tpu.dot_dimension_numbers<[1], [0], [0], [1], [0, 0, 1, 1], [], []>} : vector<8x128xf32>, vector<128x128xf32>, vector<8x128xf32> -> vector<8x128xf32>
    %14 = vector.broadcast %6 : vector<1x128xf32> to vector<8x128xf32>
    %15 = arith.addf %13, %14 : vector<8x128xf32>
    %cst_8 = arith.constant 0.000000e+00 : f32
    %16 = vector.broadcast %cst_8 : f32 to vector<8x128xf32>
    %17 = arith.maximumf %15, %16 : vector<8x128xf32>
    %cst_9 = arith.constant dense<0.000000e+00> : vector<8x128xf32>
    %18 = tpu.matmul %17, %3, %cst_9 {dimension_numbers = #tpu.dot_dimension_numbers<[1], [0], [0], [1], [0, 0, 1, 1], [], []>} : vector<8x128xf32>, vector<128x128xf32>, vector<8x128xf32> -> vector<8x128xf32>
    %19 = vector.broadcast %7 : vector<1x128xf32> to vector<8x128xf32>
    %20 = arith.addf %18, %19 : vector<8x128xf32>
    %c0_10 = arith.constant 0 : index
    %c0_11 = arith.constant 0 : index
    %21 = vector.load %arg3[%c0_10, %c0_11] : memref<8x128xf32, #tpu.memory_space<vmem>>, vector<8x128xf32>
    tpu.vector_store %arg3[%c0_10, %c0_11], %20 {strides = array<i32>} : memref<8x128xf32, #tpu.memory_space<vmem>>, vector<8x128xf32>,
    return
  }
  func.func @transform_0(%arg0: i32) -> (i32, i32) {
    %c0_i32 = arith.constant 0 : i32
    %c0_i32_0 = arith.constant 0 : i32
    return %arg0, %c0_i32 : i32, i32
  }
  func.func @transform_1(%arg0: i32) -> (i32, i32) {
    %c0_i32 = arith.constant 0 : i32
    %c0_i32_0 = arith.constant 0 : i32
    %c0_i32_1 = arith.constant 0 : i32
    return %c0_i32, %c0_i32_0 : i32, i32
  }
  func.func @transform_2(%arg0: i32) -> (i32, i32) {
    %c0_i32 = arith.constant 0 : i32
    %c0_i32_0 = arith.constant 0 : i32
    return %arg0, %c0_i32 : i32, i32
  }
}

</mosaic_0001>

<llo_original>
// kernel: tpu_custom_call.1
$region0: #{tpu_custom_call.1}
  #allocation0 [shape = 'u32[]', space=smem, size = 0x4, offset = 0x4, fixed_abs, tag = 'smem constant byte address 0x4 - core index']
  #allocation1 [shape = 'u32[72,128]{1,0:T(1,128)}', space=vmem, size = 0x9000, scoped, tag = 'internal scratch']
  %s0 = inlined_call_operand.hbm [shape: f32[8,8], index: 0, kind: input, shape index: {}]
  %s1 = inlined_call_operand.hbm [shape: f32[272,128], index: 1, kind: input, shape index: {}]
  %s2 = inlined_call_operand.hbm [shape: f32[8,128], index: 2, kind: output, shape index: {}]
  %s3 = sld [smem:[#allocation0]]
  $region26: #{tpu_custom_call.1} parent=0
    _
  %s5 = ssub.s32 1, %s3
  %s6 = scalar_select 0, %s5, %s3
  $region1: #{tpu_custom_call.1} parent=0
    #allocation2 [shape = 'u8[4096]{0}', space=vmem, size = 0x1000, scoped, tag = 'input window, operand 0, single buffered']
    #allocation3 [shape = 's32[1]{0}', space=sflag, size = 0x4, scoped, tag = 'scoped memory for tpu_custom_call.1']
    #allocation4 [shape = 's32[1]{0}', space=sflag, size = 0x4, scoped, tag = 'scoped memory for tpu_custom_call.1']
    #allocation5 [shape = 'u8[139264]{0}', space=vmem, size = 0x22000, scoped, tag = 'input window, operand 1, single buffered']
    #allocation6 [shape = 's32[1]{0}', space=sflag, size = 0x4, scoped, tag = 'scoped memory for tpu_custom_call.1']
    #allocation7 [shape = 'u8[4096]{0}', space=vmem, size = 0x1000, scoped, tag = 'output window, operand 0, single buffered']
    %7 = vsyncpa [#allocation3], 0
    %8 = vsyncpa [#allocation6], 0
    %9 = vsyncpa [#allocation4], 0
    // Predicated region
    $region2: #{tpu_custom_call.1} parent=1 // pred_check
      _
    $region3: #{tpu_custom_call.1} parent=1 // pred_check_branch
      %11 = sbr.rel (0) target = $region5
    $region4: #{tpu_custom_call.1} parent=1 // pred_region
      %13 = vsyncadd [#allocation3], 0
      %s15 = sshll.u32 %s0, 4
      %s16 = int_to_ptr.hbm [resolvable:$true] %s15
      %s17 = sshll.u32 [#allocation2], 4
      %s18 = int_to_ptr.vmem [resolvable:$true] %s17
      %20 = dma.hbm_to_vmem [thread:$0]  %s16, 128, %s18, [#allocation3]
    $region5: #{tpu_custom_call.1} parent=1 // pred_fallthru
      _
    // Predicated region
    $region6: #{tpu_custom_call.1} parent=1 // pred_check
      _
    $region7: #{tpu_custom_call.1} parent=1 // pred_check_branch
      %22 = sbr.rel (0) target = $region9
    $region8: #{tpu_custom_call.1} parent=1 // pred_region
      %24 = vsyncadd [#allocation6], 0
      %s25 = sshll.u32 %s1, 4
      %s26 = int_to_ptr.hbm [resolvable:$true] %s25
      %s27 = sshll.u32 [#allocation5], 4
      %s28 = int_to_ptr.vmem [resolvable:$true] %s27
      %33 = dma.hbm_to_vmem [thread:$0]  %s26, 4352, %s28, [#allocation6], 128, 128, 8
    $region9: #{tpu_custom_call.1} parent=1 // pred_fallthru
      _
    // Predicated region
    $region10: #{tpu_custom_call.1} parent=1 // pred_check
      _
    $region11: #{tpu_custom_call.1} parent=1 // pred_check_branch
      %35 = sbr.rel (0) target = $region13
    $region12: #{tpu_custom_call.1} parent=1 // pred_region
      %37 = dma.done [#allocation3], 128
    $region13: #{tpu_custom_call.1} parent=1 // pred_fallthru
      _
    // Predicated region
    $region14: #{tpu_custom_call.1} parent=1 // pred_check
      _
    $region15: #{tpu_custom_call.1} parent=1 // pred_check_branch
      %39 = sbr.rel (0) target = $region17
    $region16: #{tpu_custom_call.1} parent=1 // pred_region
      %41 = dma.done [#allocation6], 4352
    $region17: #{tpu_custom_call.1} parent=1 // pred_fallthru
      _
    %v42 = vld [vmem:[#allocation2] sm:$0xff]
    %v43 = vld [vmem:[#allocation5] sm:$0xff]
    %v44 = vld [vmem:[#allocation5 + $0x8] sm:$0xff]
    %v45 = vld [vmem:[#allocation5 + $0x10] sm:$0xff]
    %v46 = vld [vmem:[#allocation5 + $0x18] sm:$0xff]
    %v47 = vld [vmem:[#allocation5 + $0x20] sm:$0xff]
    %v48 = vld [vmem:[#allocation5 + $0x28] sm:$0xff]
    %v49 = vld [vmem:[#allocation5 + $0x30] sm:$0xff]
    %v50 = vld [vmem:[#allocation5 + $0x38] sm:$0xff]
    %v51 = vld [vmem:[#allocation5 + $0x40] sm:$0xff]
    %v52 = vld [vmem:[#allocation5 + $0x48] sm:$0xff]
    %v53 = vld [vmem:[#allocation5 + $0x50] sm:$0xff]
    %v54 = vld [vmem:[#allocation5 + $0x58] sm:$0xff]
    %v55 = vld [vmem:[#allocation5 + $0x60] sm:$0xff]
    %v56 = vld [vmem:[#allocation5 + $0x68] sm:$0xff]
    %v57 = vld [vmem:[#allocation5 + $0x70] sm:$0xff]
    %v58 = vld [vmem:[#allocation5 + $0x78] sm:$0xff]
    %v59 = vld [vmem:[#allocation5 + $0x80] sm:$0xff]
    %v60 = vld [vmem:[#allocation5 + $0x88] sm:$0xff]
    %v61 = vld [vmem:[#allocation5 + $0x90] sm:$0xff]
    %v62 = vld [vmem:[#allocation5 + $0x98] sm:$0xff]
    %v63 = vld [vmem:[#allocation5 + $0xa0] sm:$0xff]
    %v64 = vld [vmem:[#allocation5 + $0xa8] sm:$0xff]
    %v65 = vld [vmem:[#allocation5 + $0xb0] sm:$0xff]
    %v66 = vld [vmem:[#allocation5 + $0xb8] sm:$0xff]
    %v67 = vld [vmem:[#allocation5 + $0xc0] sm:$0xff]
    %v68 = vld [vmem:[#allocation5 + $0xc8] sm:$0xff]
    %v69 = vld [vmem:[#allocation5 + $0xd0] sm:$0xff]
    %v70 = vld [vmem:[#allocation5 + $0xd8] sm:$0xff]
    %v71 = vld [vmem:[#allocation5 + $0xe0] sm:$0xff]
    %v72 = vld [vmem:[#allocation5 + $0xe8] sm:$0xff]
    %v73 = vld [vmem:[#allocation5 + $0xf0] sm:$0xff]
    %v74 = vld [vmem:[#allocation5 + $0xf8] sm:$0xff]
    %v75 = vld [vmem:[#allocation5 + $0x100] sm:$0xff]
    %v76 = vld [vmem:[#allocation5 + $0x108] sm:$0xff]
    %v77 = vperm.slane %v76, 0
    %vm78 = vcmask 64512
    %v80 = vsel %vm78, %v42, 0
    %82 = vmatpush.msra.mxu0 0.0
    %83 = vmatpush.msra.mxu0 0.0
    %84 = vmatpush.msra.mxu0 0.0
    %85 = vmatpush.msra.mxu0 0.0
    %86 = vmatpush.msra.mxu0 0.0
    %87 = vmatpush.msra.mxu0 0.0
    %88 = vmatpush.msra.mxu0 0.0
    %89 = vmatpush.msra.mxu0 0.0
    %90 = vmatpush.msra.mxu0 0.0
    %91 = vmatpush.msra.mxu0 0.0
    %92 = vmatpush.msra.mxu0 0.0
    %93 = vmatpush.msra.mxu0 0.0
    %94 = vmatpush.msra.mxu0 0.0
    %95 = vmatpush.msra.mxu0 0.0
    %96 = vmatpush.msra.mxu0 0.0
    %97 = vmatpush.msra.mxu0 %v43
    %98 = vmatmul.f32.gmra.mxu0 %v80
    %v99 = vpop.f32.mrf.mxu0
    %v100 = vadd.f32 %v77, %v99
    %101 = vdwg.mxu0
    %v102 = vmax.f32 %v100, 0.0
    %v103 = vperm.slane %v76, 1
    %104 = vmatpush.msra.mxu0 %v59
    %105 = vmatpush.msra.mxu0 %v58
    %106 = vmatpush.msra.mxu0 %v57
    %107 = vmatpush.msra.mxu0 %v56
    %108 = vmatpush.msra.mxu0 %v55
    %109 = vmatpush.msra.mxu0 %v54
    %110 = vmatpush.msra.mxu0 %v53
    %111 = vmatpush.msra.mxu0 %v52
    %112 = vmatpush.msra.mxu0 %v51
    %113 = vmatpush.msra.mxu0 %v50
    %114 = vmatpush.msra.mxu0 %v49
    %115 = vmatpush.msra.mxu0 %v48
    %116 = vmatpush.msra.mxu0 %v47
    %117 = vmatpush.msra.mxu0 %v46
    %118 = vmatpush.msra.mxu0 %v45
    %119 = vmatpush.msra.mxu0 %v44
    %120 = vmatmul.f32.gmra.mxu0 %v102
    %v121 = vpop.f32.mrf.mxu0
    %v122 = vadd.f32 %v103, %v121
    %123 = vdwg.mxu0
    %v124 = vmax.f32 %v122, 0.0
    %v125 = vperm.slane %v76, 2
    %126 = vmatpush.msra.mxu0 %v75
    %127 = vmatpush.msra.mxu0 %v74
    %128 = vmatpush.msra.mxu0 %v73
    %129 = vmatpush.msra.mxu0 %v72
    %130 = vmatpush.msra.mxu0 %v71
    %131 = vmatpush.msra.mxu0 %v70
    %132 = vmatpush.msra.mxu0 %v69
    %133 = vmatpush.msra.mxu0 %v68
    %134 = vmatpush.msra.mxu0 %v67
    %135 = vmatpush.msra.mxu0 %v66
    %136 = vmatpush.msra.mxu0 %v65
    %137 = vmatpush.msra.mxu0 %v64
    %138 = vmatpush.msra.mxu0 %v63
    %139 = vmatpush.msra.mxu0 %v62
    %140 = vmatpush.msra.mxu0 %v61
    %141 = vmatpush.msra.mxu0 %v60
    %142 = vmatmul.f32.gmra.mxu0 %v124
    %v143 = vpop.f32.mrf.mxu0
    %v144 = vadd.f32 %v125, %v143
    %145 = vdwg.mxu0
    %146 = vst [vmem:[#allocation7] sm:$0xff] %v144
    // Predicated region
    $region18: #{tpu_custom_call.1} parent=1 // pred_check
      _
    $region19: #{tpu_custom_call.1} parent=1 // pred_check_branch
      %148 = sbr.rel (0) target = $region21
    $region20: #{tpu_custom_call.1} parent=1 // pred_region
      %150 = vsyncadd [#allocation4], 0
      %s152 = sshll.u32 [#allocation7], 4
      %s153 = int_to_ptr.vmem [resolvable:$true] %s152
      %s154 = sshll.u32 %s2, 4
      %s155 = int_to_ptr.hbm [resolvable:$true] %s154
      %157 = dma.vmem_to_hbm [thread:$0]  %s153, 128, %s155, [#allocation4]
    $region21: #{tpu_custom_call.1} parent=1 // pred_fallthru
      _
    // Predicated region
    $region22: #{tpu_custom_call.1} parent=1 // pred_check
      _
    $region23: #{tpu_custom_call.1} parent=1 // pred_check_branch
      %159 = sbr.rel (0) target = $region25
    $region24: #{tpu_custom_call.1} parent=1 // pred_region
      %161 = dma.done [#allocation4], 128
    $region25: #{tpu_custom_call.1} parent=1 // pred_fallthru
      _
    %162 = vsyncpa [#allocation3], 1
    %163 = vsyncpa [#allocation6], 1
    %164 = vsyncpa [#allocation4], 1

</llo_original>
